<compile_context>
chip_gen: v7x
topology: tpu7x:2x2x1
jax: 0.10.0
libtpu: 0.0.40
codegen_flags: <defaults>
</compile_context>

<pallas_src>
import functools

import jax
import jax.numpy as jnp
from jax.experimental import pallas as pl
from jax.experimental.pallas import tpu as pltpu


def _round_up(x, m):
    return ((x + m - 1) // m) * m


def _cdiv(a, b):
    return (a + b - 1) // b


def _choose_tile(dim, desired, gran):
    """Pick (tile, padded_dim) with tile % gran == 0 and padded_dim % tile == 0.

    Pads only to `gran` granularity where possible: instead of rounding the dim
    up to a full tile multiple (worst case ~1 tile of waste), the dim is split
    into the fewest blocks of size <= desired and the blocks are balanced, so
    padding waste is bounded by < gran per block.
    """
    dim_al = _round_up(dim, gran)
    desired = max(gran, min(desired, dim_al))
    if dim_al <= desired:
        return dim_al, dim_al
    nblocks = _cdiv(dim_al, desired)
    tile = _round_up(_cdiv(dim_al, nblocks), gran)
    return tile, tile * nblocks


def _mylayer_kernel(x_ref, b_ref, w_ref, o_ref, acc_ref, *, mxu_dtype):
    k = pl.program_id(2)

    # k == 0: zero the resident f32 accumulator for this (i, j) output tile.
    @pl.when(k == 0)
    def _():
        acc_ref[...] = jnp.zeros_like(acc_ref)

    # Bias is VMEM-resident (full padded K); slice the current k window.
    tk = x_ref.shape[1]
    off = pl.multiple_of(k * tk, 128)
    b = b_ref[:, pl.ds(off, tk)]

    # Elementwise hot path (VPU): x^2 + bias in f32, cast once for the MXU.
    x = x_ref[...]
    xin = (x * x + b).astype(mxu_dtype)

    # MXU hot path; weight already in mxu_dtype (cast once in the wrapper).
    acc_ref[...] += jnp.dot(xin, w_ref[...], preferred_element_type=jnp.float32)

    # last k: cast + lane-dense store (tn is a multiple of 128).
    @pl.when(k == pl.num_programs(2) - 1)
    def _():
        o_ref[...] = acc_ref[...].astype(o_ref.dtype)


def mylayer(x, weight, bias=None, *, tm=512, tn=512, tk=1024, mxu_dtype=jnp.bfloat16):
    """y = (x**2 + bias) @ weight   (Mylayer.forward)

    x:      (M, in_features)            float32
    weight: (in_features, out_features) float32 (cast once to mxu_dtype)
    bias:   (in_features,) or None      float32

    mxu_dtype=bf16 trades a little input precision (f32 accumulation is kept)
    for ~2x weight bandwidth / MXU throughput; pass jnp.float32 for fidelity.
    """
    M, K = x.shape
    Kw, N = weight.shape
    assert Kw == K
    if bias is None:
        bias = jnp.zeros((K,), x.dtype)
    assert bias.shape == (K,)

    # ---- tile / padding selection (pad only to (8,128) granularity) ----
    tm, Mp = _choose_tile(M, tm, 8)
    tk, Kp = _choose_tile(K, tk, 128)
    n_align = _round_up(N, 128)
    if Mp == tm and n_align >= 256:
        # Single i-block: give the parallel j axis >=2 blocks so both v7x
        # TensorCores get work (no-op on the choice when N is already small).
        tn = min(tn, max(128, (n_align // 2) // 128 * 128))
    tn, Np = _choose_tile(N, tn, 128)

    # ---- one-time wrapper-side prep: bf16 weight, conditional zero-padding ----
    # Zero-padded K columns give x^2 + 0 = 0 against zero weight rows (no
    # contribution); padded M rows / N cols are sliced off after the call.
    wq = weight.astype(mxu_dtype) if weight.dtype != mxu_dtype else weight
    xp = x if (Mp == M and Kp == K) else jnp.pad(x, ((0, Mp - M), (0, Kp - K)))
    wp = wq if (Kp == K and Np == N) else jnp.pad(wq, ((0, Kp - K), (0, Np - N)))
    bp = bias.reshape(1, K)
    if Kp != K:
        bp = jnp.pad(bp, ((0, 0), (0, Kp - K)))

    grid = (Mp // tm, Np // tn, Kp // tk)
    kernel = functools.partial(_mylayer_kernel, mxu_dtype=mxu_dtype)

    # VMEM footprint (double-buffered in/out + accumulator + resident bias).
    isz = lambda dt: jnp.dtype(dt).itemsize
    vmem_est = (
        2 * tm * tk * isz(x.dtype)        # x tiles
        + 2 * tk * tn * isz(mxu_dtype)    # weight tiles (bf16 by default)
        + 2 * tm * tn * isz(x.dtype)      # output tiles
        + tm * tn * 4                     # f32 accumulator
        + 2 * Kp * isz(bias.dtype)        # bias (resident)
    )
    vmem_limit = int(min(max(vmem_est + (4 << 20), 32 << 20), 96 << 20))

    # Advisory cost: account for re-streaming (x read once per j-block, weight
    # once per i-block) and the bf16 weight bytes.
    cost = pl.CostEstimate(
        flops=2 * M * K * N + 2 * M * K,
        transcendentals=0,
        bytes_accessed=int(
            grid[1] * Mp * Kp * isz(x.dtype)
            + grid[0] * Kp * Np * isz(mxu_dtype)
            + Mp * Np * isz(x.dtype)
            + Kp * isz(bias.dtype)
        ),
    )

    out = pl.pallas_call(
        kernel,
        out_shape=jax.ShapeDtypeStruct((Mp, Np), x.dtype),
        grid_spec=pltpu.PrefetchScalarGridSpec(
            num_scalar_prefetch=0,
            grid=grid,
            in_specs=[
                pl.BlockSpec((tm, tk), lambda i, j, k: (i, k)),   # x tile
                pl.BlockSpec((1, Kp), lambda i, j, k: (0, 0)),    # bias (resident)
                pl.BlockSpec((tk, tn), lambda i, j, k: (k, j)),   # weight tile
            ],
            out_specs=pl.BlockSpec((tm, tn), lambda i, j, k: (i, j)),
            scratch_shapes=[pltpu.VMEM((tm, tn), jnp.float32)],
        ),
        compiler_params=pltpu.CompilerParams(
            dimension_semantics=("parallel", "parallel", "arbitrary"),
            vmem_limit_bytes=vmem_limit,
        ),
        cost_estimate=cost,
    )(xp, bp, wp)

    if Mp != M or Np != N:
        out = out[:M, :N]
    return out


if __name__ == "__main__":
    # Small shapes consistent with the module's 2-D forward.
    M, in_features, out_features = 16, 256, 192

    key = jax.random.PRNGKey(0)
    kx, kw, kb = jax.random.split(key, 3)

    x = jax.random.normal(kx, (M, in_features), dtype=jnp.float32)
    # Deterministic in-script parameter init (synthetic, no checkpoint load).
    weight = jax.random.normal(kw, (in_features, out_features), dtype=jnp.float32) * 0.1
    bias = jax.random.normal(kb, (in_features,), dtype=jnp.float32) * 0.1

    y_ref = jnp.dot(x * x + bias, weight, precision=jax.lax.Precision.HIGHEST)

    # 1) f32 MXU path with small tiles: exercises the full 3-D grid,
    #    multi-step K accumulation, N padding, and output slicing.
    y_f32 = mylayer(x, weight, bias, tm=8, tn=128, tk=128, mxu_dtype=jnp.float32)
    jax.block_until_ready(y_f32)
    assert y_f32.shape == (M, out_features)
    assert jnp.allclose(y_f32, y_ref, atol=1e-2, rtol=1e-2)

    # 2) Default perf config (bf16 weight in HBM, f32 accumulate, >=2 j-blocks).
    y_bf16 = mylayer(x, weight, bias)
    jax.block_until_ready(y_bf16)
    assert y_bf16.shape == (M, out_features)
    assert jnp.allclose(y_bf16, y_ref, atol=1e-1, rtol=5e-2)

    # 3) Non-(8,128)-aligned shape: exercises minimal-granularity padding.
    M2, K2, N2 = 13, 200, 150
    x2 = jax.random.normal(kx, (M2, K2), dtype=jnp.float32)
    w2 = jax.random.normal(kw, (K2, N2), dtype=jnp.float32) * 0.1
    b2 = jax.random.normal(kb, (K2,), dtype=jnp.float32) * 0.1
    y2_ref = jnp.dot(x2 * x2 + b2, w2, precision=jax.lax.Precision.HIGHEST)
    y2 = mylayer(x2, w2, b2)
    jax.block_until_ready(y2)
    assert y2.shape == (M2, N2)
    assert jnp.allclose(y2, y2_ref, atol=1e-1, rtol=5e-2)

    print("KERNEL_OK")
</pallas_src>

<mosaic_0001>
module attributes {stable_mosaic.version = 11 : i64} {
  func.func @_mylayer_kernel(%arg0: i32, %arg1: i32, %arg2: i32, %arg3: memref<8x128xf32, #tpu.memory_space<vmem>>, %arg4: memref<1x256xf32, #tpu.memory_space<vmem>>, %arg5: memref<128x128xf32, #tpu.memory_space<vmem>>, %arg6: memref<8x128xf32, #tpu.memory_space<vmem>>, %arg7: memref<8x128xf32, #tpu.memory_space<vmem>>) attributes {dimension_semantics = [#tpu.dimension_semantics<parallel>, #tpu.dimension_semantics<parallel>, #tpu.dimension_semantics<arbitrary>], iteration_bounds = array<i64: 2, 2, 2>, scalar_prefetch = 0 : i64, scratch_operands = 1 : i64, tpu.core_type = #tpu.core_type<tc>, window_params = [{transform_indices = @transform_0, window_bounds = array<i64: 8, 128>}, {pipeline_mode = #tpu.pipeline_mode<synchronous>, transform_indices = @transform_1, window_bounds = array<i64: 1, 256>}, {transform_indices = @transform_2, window_bounds = array<i64: 128, 128>}, {transform_indices = @transform_3, window_bounds = array<i64: 8, 128>}]} {
    %c0_i32 = arith.constant 0 : i32
    %0 = arith.cmpi eq, %arg2, %c0_i32 : i32
    %1 = arith.extui %0 : i1 to i32
    %c0_i32_0 = arith.constant 0 : i32
    %2 = arith.cmpi ne, %1, %c0_i32_0 : i32
    scf.if %2 {
      %cst_10 = arith.constant 0.000000e+00 : f32
      %19 = vector.broadcast %cst_10 : f32 to vector<8x128xf32>
      %c0_11 = arith.constant 0 : index
      %c0_12 = arith.constant 0 : index
      %20 = vector.load %arg7[%c0_11, %c0_12] : memref<8x128xf32, #tpu.memory_space<vmem>>, vector<8x128xf32>
      tpu.vector_store %arg7[%c0_11, %c0_12], %19 {strides = array<i32>} : memref<8x128xf32, #tpu.memory_space<vmem>>, vector<8x128xf32>,
    } else {
    }
    %c128_i32 = arith.constant 128 : i32
    %3 = arith.muli %arg2, %c128_i32 : i32
    %4 = tpu.assume_multiple %3, 128 : i32
    %c0 = arith.constant 0 : index
    %5 = arith.index_cast %4 : i32 to index
    %6 = vector.load %arg4[%c0, %5] : memref<1x256xf32, #tpu.memory_space<vmem>>, vector<1x128xf32>
    %c0_1 = arith.constant 0 : index
    %c0_2 = arith.constant 0 : index
    %7 = vector.load %arg3[%c0_1, %c0_2] : memref<8x128xf32, #tpu.memory_space<vmem>>, vector<8x128xf32>
    %8 = arith.mulf %7, %7 : vector<8x128xf32>
    %9 = vector.broadcast %6 : vector<1x128xf32> to vector<8x128xf32>
    %10 = arith.addf %8, %9 : vector<8x128xf32>
    %c0_3 = arith.constant 0 : index
    %c0_4 = arith.constant 0 : index
    %11 = vector.load %arg7[%c0_3, %c0_4] : memref<8x128xf32, #tpu.memory_space<vmem>>, vector<8x128xf32>
    %c0_5 = arith.constant 0 : index
    %c0_6 = arith.constant 0 : index
    %12 = vector.load %arg5[%c0_5, %c0_6] : memref<128x128xf32, #tpu.memory_space<vmem>>, vector<128x128xf32>
    %cst = arith.constant dense<0.000000e+00> : vector<8x128xf32>
    %13 = tpu.matmul %10, %12, %cst {dimension_numbers = #tpu.dot_dimension_numbers<[1], [0], [0], [1], [0, 0, 1, 1], [], []>} : vector<8x128xf32>, vector<128x128xf32>, vector<8x128xf32> -> vector<8x128xf32>
    %14 = arith.addf %11, %13 : vector<8x128xf32>
    %c0_7 = arith.constant 0 : index
    %c0_8 = arith.constant 0 : index
    %15 = vector.load %arg7[%c0_7, %c0_8] : memref<8x128xf32, #tpu.memory_space<vmem>>, vector<8x128xf32>
    tpu.vector_store %arg7[%c0_7, %c0_8], %14 {strides = array<i32>} : memref<8x128xf32, #tpu.memory_space<vmem>>, vector<8x128xf32>,
    %c1_i32 = arith.constant 1 : i32
    %16 = arith.cmpi eq, %arg2, %c1_i32 : i32
    %17 = arith.extui %16 : i1 to i32
    %c0_i32_9 = arith.constant 0 : i32
    %18 = arith.cmpi ne, %17, %c0_i32_9 : i32
    scf.if %18 {
      %c0_10 = arith.constant 0 : index
      %c0_11 = arith.constant 0 : index
      %19 = vector.load %arg7[%c0_10, %c0_11] : memref<8x128xf32, #tpu.memory_space<vmem>>, vector<8x128xf32>
      %c0_12 = arith.constant 0 : index
      %c0_13 = arith.constant 0 : index
      %20 = vector.load %arg6[%c0_12, %c0_13] : memref<8x128xf32, #tpu.memory_space<vmem>>, vector<8x128xf32>
      tpu.vector_store %arg6[%c0_12, %c0_13], %19 {strides = array<i32>} : memref<8x128xf32, #tpu.memory_space<vmem>>, vector<8x128xf32>,
    } else {
    }
    return
  }
  func.func @transform_0(%arg0: i32, %arg1: i32, %arg2: i32) -> (i32, i32) {
    %c0_i32 = arith.constant 0 : i32
    return %arg0, %arg2 : i32, i32
  }
  func.func @transform_1(%arg0: i32, %arg1: i32, %arg2: i32) -> (i32, i32) {
    %c0_i32 = arith.constant 0 : i32
    %c0_i32_0 = arith.constant 0 : i32
    %c0_i32_1 = arith.constant 0 : i32
    return %c0_i32, %c0_i32_0 : i32, i32
  }
  func.func @transform_2(%arg0: i32, %arg1: i32, %arg2: i32) -> (i32, i32) {
    %c0_i32 = arith.constant 0 : i32
    return %arg2, %arg1 : i32, i32
  }
  func.func @transform_3(%arg0: i32, %arg1: i32, %arg2: i32) -> (i32, i32) {
    %c0_i32 = arith.constant 0 : i32
    return %arg0, %arg1 : i32, i32
  }
}

</mosaic_0001>

<llo_original>
// kernel: tpu_custom_call.1
$region0: #{tpu_custom_call.1}
  #allocation0 [shape = 'u32[]', space=smem, size = 0x4, offset = 0x4, fixed_abs, tag = 'smem constant byte address 0x4 - core index']
  #allocation1 [shape = 'u32[144,128]{1,0:T(1,128)}', space=vmem, size = 0x12000, scoped, tag = 'internal scratch']
  #allocation2 [shape = 'f32[8,128]{1,0:T(8,128)}', space=vmem, size = 0x1000, scoped, tag = 'scratch operand']
  %s0 = inlined_call_operand.hbm [shape: f32[16,256], index: 0, kind: input, shape index: {}]
  %s1 = inlined_call_operand.vmem [shape: f32[1,256], index: 1, kind: input, shape index: {}]
  %s2 = inlined_call_operand.hbm [shape: f32[256,256], index: 2, kind: input, shape index: {}]
  %s3 = inlined_call_operand.hbm [shape: f32[16,256], index: 3, kind: output, shape index: {}]
  %s4 = sld [smem:[#allocation0]]
  $region61: #{tpu_custom_call.1} parent=0
    _
  %s6 = ssub.s32 1, %s4
  %s7 = scalar_select 0, %s6, %s4
  $region1: #{tpu_custom_call.1} parent=0
    #allocation3 [shape = 'u8[8192]{0}', space=vmem, size = 0x2000, scoped, tag = 'input window, operand 0']
    #allocation4 [shape = 's32[2]{0}', space=sflag, size = 0x8, scoped, tag = 'scoped memory for tpu_custom_call.1']
    #allocation5 [shape = 's32[2]{0}', space=sflag, size = 0x8, scoped, tag = 'scoped memory for tpu_custom_call.1']
    #allocation6 [shape = 'u8[131072]{0}', space=vmem, size = 0x20000, scoped, tag = 'input window, operand 2']
    #allocation7 [shape = 's32[2]{0}', space=sflag, size = 0x8, scoped, tag = 'scoped memory for tpu_custom_call.1']
    #allocation8 [shape = 'u8[8192]{0}', space=vmem, size = 0x2000, scoped, tag = 'output window, operand 0']
    %8 = vsyncpa [#allocation4], 0
    %s9 = scalar_lea.sflag [#allocation4], 1
    %10 = vsyncpa %s9, 0
    %11 = vsyncpa [#allocation7], 0
    %s12 = scalar_lea.sflag [#allocation7], 1
    %13 = vsyncpa %s12, 0
    %14 = vsyncpa [#allocation5], 0
    %s15 = scalar_lea.sflag [#allocation5], 1
    %16 = vsyncpa %s15, 0
    loop: start=0, step=1, limit=10
    $region2: #{tpu_custom_call.1} parent=1 // loop_pre_header
      _
    $region3: #{tpu_custom_call.1} parent=1 // loop_header
      %s18 = sphi 0, %s22
      %p19 = scmp.ge.s32.totalorder %s18, 10
      %s25 = sphi 0, %s44
      %s26 = sphi 0, %s40
      %s27 = sphi 0, %s36
      %s28 = sphi 0, %s25
      %s29 = sphi 0, %s26
      %s30 = sphi 0, %s27
      %s31 = sphi 0, %s28
      %s32 = sphi 0, %s29
      %s33 = sphi 0, %s30
      %s49 = sphi 0, %s51
      %s52 = sphi 0, %s49
      %s53 = sphi 0, %s52
      %s69 = sphi 0, %s53
      %s73 = sphi 0, %s73
      %s75 = sphi 0, %s73
      %s76 = sphi 0, %s75
      %s90 = sphi 0, %s76
      %s98 = sphi 0, %s100
      %s101 = sphi 0, %s98
      %s102 = sphi 0, %s101
      %s118 = sphi 0, %s102
      %s126 = sphi 0, %s128
      %s129 = sphi 0, %s126
      %s130 = sphi 0, %s129
      %s146 = sphi 0, %s130
    $region4: #{tpu_custom_call.1} parent=1 // loop_header_branch
      %21 = sbr.rel (%p19) target = $region8
    $region5: #{tpu_custom_call.1} parent=1 // loop_body
      %s23 = ssub.s32 %s18, 1
      %s24 = ssub.s32 %s18, 2
      %s34 = sadd.s32 1, %s27
      %p35 = scmp.ge.s32.totalorder %s34, 2
      %s36 = scalar_select %p35, 0, %s34
      %s37 = sadd.s32 1, %s26
      %s38 = scalar_select %p35, %s37, %s26
      %p39 = scmp.ge.s32.totalorder %s38, 2
      %s40 = scalar_select %p39, 0, %s38
      %s41 = sadd.s32 1, %s25
      %s42 = scalar_select %p39, %s41, %s25
      %p43 = scmp.ge.s32.totalorder %s42, 2
      %s44 = scalar_select %p43, 0, %s42
      %s45 = ssub.s32 %s25, %s44
      %s46 = ssub.s32 %s27, %s36
      %s47 = sor.u32 %s45, %s46
      %p48 = scmp.eq.s32.totalorder %s47, 0
      %s50 = sadd.s32 %s49, 1
      %s51 = scalar_select %p48, %s49, %s50
      %p54 = pneg %p48
      %p55 = scmp.eq.s32.totalorder %s18, 7
      %p56 = por %p54, %p55
      %p57 = scmp.ne.s32.totalorder %s49, %s52
      %p58 = scmp.eq.s32.totalorder %s18, 0
      %p59 = por %p57, %p58
      %p60 = scmp.ne.s32.totalorder %s49, %s52
      %p61 = scmp.eq.s32.totalorder %s23, 7
      %p62 = por %p60, %p61
      %p63 = scmp.ne.s32.totalorder %s52, %s53
      %p64 = scmp.eq.s32.totalorder %s23, 0
      %p65 = por %p63, %p64
      %p66 = scmp.ne.s32.totalorder %s52, %s53
      %p67 = scmp.eq.s32.totalorder %s24, 7
      %p68 = por %p66, %p67
      %p70 = scmp.ne.s32.totalorder %s53, %s69
      %p71 = scmp.eq.s32.totalorder %s24, 0
      %p72 = por %p70, %p71
      %s74 = sadd.s32 %s73, 1
      %p77 = scmp.eq.s32.totalorder %s18, 7
      %p78 = scmp.ne.s32.totalorder %s73, %s75
      %p79 = scmp.eq.s32.totalorder %s18, 0
      %p80 = por %p78, %p79
      %p81 = scmp.ne.s32.totalorder %s73, %s75
      %p82 = scmp.eq.s32.totalorder %s23, 7
      %p83 = por %p81, %p82
      %p84 = scmp.ne.s32.totalorder %s75, %s76
      %p85 = scmp.eq.s32.totalorder %s23, 0
      %p86 = por %p84, %p85
      %p87 = scmp.ne.s32.totalorder %s75, %s76
      %p88 = scmp.eq.s32.totalorder %s24, 7
      %p89 = por %p87, %p88
      %p91 = scmp.ne.s32.totalorder %s76, %s90
      %p92 = scmp.eq.s32.totalorder %s24, 0
      %p93 = por %p91, %p92
      %s94 = ssub.s32 %s27, %s36
      %s95 = ssub.s32 %s26, %s40
      %s96 = sor.u32 %s94, %s95
      %p97 = scmp.eq.s32.totalorder %s96, 0
      %s99 = sadd.s32 %s98, 1
      %s100 = scalar_select %p97, %s98, %s99
      %p103 = pneg %p97
      %p104 = scmp.eq.s32.totalorder %s18, 7
      %p105 = por %p103, %p104
      %p106 = scmp.ne.s32.totalorder %s98, %s101
      %p107 = scmp.eq.s32.totalorder %s18, 0
      %p108 = por %p106, %p107
      %p109 = scmp.ne.s32.totalorder %s98, %s101
      %p110 = scmp.eq.s32.totalorder %s23, 7
      %p111 = por %p109, %p110
      %p112 = scmp.ne.s32.totalorder %s101, %s102
      %p113 = scmp.eq.s32.totalorder %s23, 0
      %p114 = por %p112, %p113
      %p115 = scmp.ne.s32.totalorder %s101, %s102
      %p116 = scmp.eq.s32.totalorder %s24, 7
      %p117 = por %p115, %p116
      %p119 = scmp.ne.s32.totalorder %s102, %s118
      %p120 = scmp.eq.s32.totalorder %s24, 0
      %p121 = por %p119, %p120
      %s122 = ssub.s32 %s25, %s44
      %s123 = ssub.s32 %s26, %s40
      %s124 = sor.u32 %s122, %s123
      %p125 = scmp.eq.s32.totalorder %s124, 0
      %s127 = sadd.s32 %s126, 1
      %s128 = scalar_select %p125, %s126, %s127
      %p131 = pneg %p125
      %p132 = scmp.eq.s32.totalorder %s18, 7
      %p133 = por %p131, %p132
      %p134 = scmp.ne.s32.totalorder %s126, %s129
      %p135 = scmp.eq.s32.totalorder %s18, 0
      %p136 = por %p134, %p135
      %p137 = scmp.ne.s32.totalorder %s126, %s129
      %p138 = scmp.eq.s32.totalorder %s23, 7
      %p139 = por %p137, %p138
      %p140 = scmp.ne.s32.totalorder %s129, %s130
      %p141 = scmp.eq.s32.totalorder %s23, 0
      %p142 = por %p140, %p141
      %p143 = scmp.ne.s32.totalorder %s129, %s130
      %p144 = scmp.eq.s32.totalorder %s24, 7
      %p145 = por %p143, %p144
      %p147 = scmp.ne.s32.totalorder %s130, %s146
      %p148 = scmp.eq.s32.totalorder %s24, 0
      %p149 = por %p147, %p148
      %p150 = scmp.le.s32.totalorder 1, %s18
      %p151 = scmp.lt.s32.totalorder %s18, 9
      %p152 = pnand %p150, %p151
      %p153 = pneg %p152
      // Predicated region
      $region9: #{tpu_custom_call.1} parent=5 // pred_check
        _
      $region10: #{tpu_custom_call.1} parent=5 // pred_check_branch
        %155 = sbr.rel (%p152) target = $region12
      $region11: #{tpu_custom_call.1} parent=5 // pred_region
        %s156 = ssub.s32 %s18, 1
        // Predicated region
        $region13: #{tpu_custom_call.1} parent=11 // pred_check
          %p157 = pneg %p86
        $region14: #{tpu_custom_call.1} parent=11 // pred_check_branch
          %159 = sbr.rel (%p157) target = $region16
        $region15: #{tpu_custom_call.1} parent=11 // pred_region
          _
        $region16: #{tpu_custom_call.1} parent=11 // pred_fallthru
          _
      $region12: #{tpu_custom_call.1} parent=5 // pred_fallthru
        _
      %p160 = scmp.lt.s32.totalorder %s18, 8
      // Predicated region
      $region17: #{tpu_custom_call.1} parent=5 // pred_check
        %p161 = pneg %p160
      $region18: #{tpu_custom_call.1} parent=5 // pred_check_branch
        %163 = sbr.rel (%p161) target = $region20
      $region19: #{tpu_custom_call.1} parent=5 // pred_region
        // Predicated region
        $region21: #{tpu_custom_call.1} parent=19 // pred_check
          %p164 = pneg %p59
        $region22: #{tpu_custom_call.1} parent=19 // pred_check_branch
          %166 = sbr.rel (%p164) target = $region24
        $region23: #{tpu_custom_call.1} parent=19 // pred_region
          %s167 = sand.u32 %s49, 1
          %s168 = scalar_lea.sflag [#allocation4], %s167
          %s169 = sand.u32 %s49, 1
          %s170 = smul.addr %s169, 8
          %s171 = scalar_lea.vmem [#allocation3], %s170
          %s173 = ssub.s32 128, 128
          %174 = vsyncadd %s168, %s173
          %s175 = smul.addr %s25, 2
          %s176 = sadd.s32 %s27, %s175
          %s177 = smul.addr %s176, 128
          %s178 = scalar_lea.hbm %s0, %s177
          %s180 = sshll.u32 %s171, 4
          %s181 = int_to_ptr.vmem [resolvable:$true] %s180
          %183 = dma.hbm_to_vmem [thread:$0]  %s178, 128, %s181, %s168
        $region24: #{tpu_custom_call.1} parent=19 // pred_fallthru
          _
        // Predicated region
        $region25: #{tpu_custom_call.1} parent=19 // pred_check
          %p184 = pneg %p108
        $region26: #{tpu_custom_call.1} parent=19 // pred_check_branch
          %186 = sbr.rel (%p184) target = $region28
        $region27: #{tpu_custom_call.1} parent=19 // pred_region
          %s187 = sand.u32 %s98, 1
          %s188 = scalar_lea.sflag [#allocation7], %s187
          %s189 = sand.u32 %s98, 1
          %s190 = smul.addr %s189, 128
          %s191 = scalar_lea.vmem [#allocation6], %s190
          %s192 = smul.u32 16, %s27
          %s194 = ssub.s32 2048, 2048
          %195 = vsyncadd %s188, %s194
          %s196 = smul.addr %s192, 2
          %s197 = sadd.s32 %s26, %s196
          %s198 = smul.addr %s197, 128
          %s199 = scalar_lea.hbm %s2, %s198
          %s200 = sshll.u32 %s191, 4
          %s201 = int_to_ptr.vmem [resolvable:$true] %s200
          %206 = dma.hbm_to_vmem [thread:$0]  %s199, 2048, %s201, %s188, 256, 128, 8
        $region28: #{tpu_custom_call.1} parent=19 // pred_fallthru
          _
      $region20: #{tpu_custom_call.1} parent=5 // pred_fallthru
        _
      %p207 = scmp.le.s32.totalorder 1, %s18
      %p208 = scmp.lt.s32.totalorder %s18, 9
      %p209 = pnand %p207, %p208
      %p210 = pneg %p209
      // Predicated region
      $region29: #{tpu_custom_call.1} parent=5 // pred_check
        _
      $region30: #{tpu_custom_call.1} parent=5 // pred_check_branch
        %212 = sbr.rel (%p209) target = $region32
      $region31: #{tpu_custom_call.1} parent=5 // pred_region
        %s213 = ssub.s32 %s18, 1
        %s214 = sand.u32 %s52, 1
        %s215 = scalar_lea.sflag [#allocation4], %s214
        %s216 = sand.u32 %s52, 1
        %s217 = smul.addr %s216, 8
        %s218 = scalar_lea.vmem [#allocation3], %s217
        // Predicated region
        $region33: #{tpu_custom_call.1} parent=31 // pred_check
          %p219 = pneg %p65
        $region34: #{tpu_custom_call.1} parent=31 // pred_check_branch
          %221 = sbr.rel (%p219) target = $region36
        $region35: #{tpu_custom_call.1} parent=31 // pred_region
          %222 = dma.done %s215, 128
        $region36: #{tpu_custom_call.1} parent=31 // pred_fallthru
          _
        %s223 = sand.u32 %s101, 1
        %s224 = scalar_lea.sflag [#allocation7], %s223
        %s225 = sand.u32 %s101, 1
        %s226 = smul.addr %s225, 128
        %s227 = scalar_lea.vmem [#allocation6], %s226
        // Predicated region
        $region37: #{tpu_custom_call.1} parent=31 // pred_check
          %p228 = pneg %p114
        $region38: #{tpu_custom_call.1} parent=31 // pred_check_branch
          %230 = sbr.rel (%p228) target = $region40
        $region39: #{tpu_custom_call.1} parent=31 // pred_region
          %231 = dma.done %s224, 2048
        $region40: #{tpu_custom_call.1} parent=31 // pred_fallthru
          _
        %s232 = sand.u32 %s52, 1
        %s233 = scalar_lea.sflag [#allocation4], %s232
        %s234 = sand.u32 %s52, 1
        %s235 = smul.addr %s234, 8
        %s236 = scalar_lea.vmem [#allocation3], %s235
        %p237 = pneg %p65
        %p238 = pneg %p62
        %p239 = pneg %p86
        %p240 = pneg %p83
        %s241 = sand.u32 %s101, 1
        %s242 = scalar_lea.sflag [#allocation7], %s241
        %s243 = sand.u32 %s101, 1
        %s244 = smul.addr %s243, 128
        %s245 = scalar_lea.vmem [#allocation6], %s244
        %p246 = pneg %p114
        %p247 = pneg %p111
        %p248 = pneg %p142
        %p249 = pneg %p139
        %s250 = sand.u32 %s129, 1
        %s251 = scalar_lea.sflag [#allocation5], %s250
        %s252 = sand.u32 %s129, 1
        %s253 = smul.addr %s252, 8
        %s254 = scalar_lea.vmem [#allocation8], %s253
        %s255 = smul.u32 16, %s30
        %p256 = scmp.eq.s32.totalorder %s30, 0
        // Predicated region
        $region41: #{tpu_custom_call.1} parent=31 // pred_check
          %p257 = pneg %p256
        $region42: #{tpu_custom_call.1} parent=31 // pred_check_branch
          %259 = sbr.rel (%p257) target = $region44
        $region43: #{tpu_custom_call.1} parent=31 // pred_region
          %260 = vst [vmem:[#allocation2] sm:$0xff] 0.0
        $region44: #{tpu_custom_call.1} parent=31 // pred_fallthru
          _
        %s261 = smul.u32 %s30, 128
        %s262 = sshra.s32 %s261, 7
        %s263 = sand.u32 %s261, 127
        %s264 = scalar_lea.vmem %s1, %s262
        %v265 = vld [vmem:[%s264] sm:$0x1]
        %v266 = vld [vmem:[%s218] sm:$0xff]
        %v267 = vmul.f32 %v266, %v266
        %v269 = vlaneseq
        %v270 = vshrl.u32 %v269, 7
        %v271 = vsub.s32 0, %v270
        %v272 = vrot.slane %v265, %v271
        %v274 = vadd.f32 %v267, %v272
        %v275 = vld [vmem:[#allocation2] sm:$0xff]
        %v276 = vld [vmem:[%s227] sm:$0xff]
        %v277 = vld [vmem:[%s227 + $0x8] sm:$0xff]
        %v278 = vld [vmem:[%s227 + $0x10] sm:$0xff]
        %v279 = vld [vmem:[%s227 + $0x18] sm:$0xff]
        %v280 = vld [vmem:[%s227 + $0x20] sm:$0xff]
        %v281 = vld [vmem:[%s227 + $0x28] sm:$0xff]
        %v282 = vld [vmem:[%s227 + $0x30] sm:$0xff]
        %v283 = vld [vmem:[%s227 + $0x38] sm:$0xff]
        %v284 = vld [vmem:[%s227 + $0x40] sm:$0xff]
        %v285 = vld [vmem:[%s227 + $0x48] sm:$0xff]
        %v286 = vld [vmem:[%s227 + $0x50] sm:$0xff]
        %v287 = vld [vmem:[%s227 + $0x58] sm:$0xff]
        %v288 = vld [vmem:[%s227 + $0x60] sm:$0xff]
        %v289 = vld [vmem:[%s227 + $0x68] sm:$0xff]
        %v290 = vld [vmem:[%s227 + $0x70] sm:$0xff]
        %v291 = vld [vmem:[%s227 + $0x78] sm:$0xff]
        %292 = vmatprep.subr.mxu0 0.0
        %293 = vmatpush1.msra.mxu0 %v276
        %294 = vmatprep.subr.mxu0 0.0
        %295 = vmatpush1.msra.mxu0 %v277
        %296 = vmatprep.subr.mxu0 0.0
        %297 = vmatpush1.msra.mxu0 %v278
        %298 = vmatprep.subr.mxu0 0.0
        %299 = vmatpush1.msra.mxu0 %v279
        %300 = vmatprep.subr.mxu0 0.0
        %301 = vmatpush1.msra.mxu0 %v280
        %302 = vmatprep.subr.mxu0 0.0
        %303 = vmatpush1.msra.mxu0 %v281
        %304 = vmatprep.subr.mxu0 0.0
        %305 = vmatpush1.msra.mxu0 %v282
        %306 = vmatprep.subr.mxu0 0.0
        %307 = vmatpush1.msra.mxu0 %v283
        %308 = vmatprep.subr.mxu0 0.0
        %309 = vmatpush1.msra.mxu0 %v284
        %310 = vmatprep.subr.mxu0 0.0
        %311 = vmatpush1.msra.mxu0 %v285
        %312 = vmatprep.subr.mxu0 0.0
        %313 = vmatpush1.msra.mxu0 %v286
        %314 = vmatprep.subr.mxu0 0.0
        %315 = vmatpush1.msra.mxu0 %v287
        %316 = vmatprep.subr.mxu0 0.0
        %317 = vmatpush1.msra.mxu0 %v288
        %318 = vmatprep.subr.mxu0 0.0
        %319 = vmatpush1.msra.mxu0 %v289
        %320 = vmatprep.subr.mxu0 0.0
        %321 = vmatpush1.msra.mxu0 %v290
        %322 = vmatprep.subr.mxu0 0.0
        %323 = vmatpush1.msra.mxu0 %v291
        %324 = vmatprep.subr.mxu0 0.0
        %325 = vmatpush1.msra.mxu0 0.0
        %326 = vmatprep.subr.mxu0 0.0
        %327 = vmatpush1.msra.mxu0 0.0
        %328 = vmatprep.subr.mxu0 0.0
        %329 = vmatpush1.msra.mxu0 0.0
        %330 = vmatprep.subr.mxu0 0.0
        %331 = vmatpush1.msra.mxu0 0.0
        %332 = vmatprep.subr.mxu0 0.0
        %333 = vmatpush1.msra.mxu0 0.0
        %334 = vmatprep.subr.mxu0 0.0
        %335 = vmatpush1.msra.mxu0 0.0
        %336 = vmatprep.subr.mxu0 0.0
        %337 = vmatpush1.msra.mxu0 0.0
        %338 = vmatprep.subr.mxu0 0.0
        %339 = vmatpush1.msra.mxu0 0.0
        %340 = vmatprep.subr.mxu0 0.0
        %341 = vmatpush1.msra.mxu0 0.0
        %342 = vmatprep.subr.mxu0 0.0
        %343 = vmatpush1.msra.mxu0 0.0
        %344 = vmatprep.subr.mxu0 0.0
        %345 = vmatpush1.msra.mxu0 0.0
        %346 = vmatprep.subr.mxu0 0.0
        %347 = vmatpush1.msra.mxu0 0.0
        %348 = vmatprep.subr.mxu0 0.0
        %349 = vmatpush1.msra.mxu0 0.0
        %350 = vmatprep.subr.mxu0 0.0
        %351 = vmatpush1.msra.mxu0 0.0
        %352 = vmatprep.subr.mxu0 0.0
        %353 = vmatpush1.msra.mxu0 0.0
        %354 = vmatprep.subr.mxu0 0.0
        %355 = vmatpush1.msra.mxu0 0.0
        %356 = vmatprep.mubr.f32.mxu0 0.0
        %357 = vmatmul.mubr.f32.gmra.mrb[0].mxu0 %v274
        %v358 = vpop.f32.mrb[0].mxu0
        %v359 = vadd.f32 0.0, %v358
        %v360 = vpop.f32.mrb[0].mxu0
        %361 = vdwg.mxu0
        %v362 = vadd.f32 %v275, %v359
        %363 = vst [vmem:[#allocation2] sm:$0xff] %v362
        %p364 = scmp.eq.s32.totalorder %s30, 1
        // Predicated region
        $region45: #{tpu_custom_call.1} parent=31 // pred_check
          %p365 = pneg %p364
        $region46: #{tpu_custom_call.1} parent=31 // pred_check_branch
          %367 = sbr.rel (%p365) target = $region48
        $region47: #{tpu_custom_call.1} parent=31 // pred_region
          %v368 = vld [vmem:[#allocation2] sm:$0xff]
          %369 = vst [vmem:[%s254] sm:$0xff] %v368
        $region48: #{tpu_custom_call.1} parent=31 // pred_fallthru
          _
        %s370 = sand.u32 %s129, 1
        %s371 = scalar_lea.sflag [#allocation5], %s370
        %s372 = sand.u32 %s129, 1
        %s373 = smul.addr %s372, 8
        %s374 = scalar_lea.vmem [#allocation8], %s373
        // Predicated region
        $region49: #{tpu_custom_call.1} parent=31 // pred_check
          %p375 = pneg %p139
        $region50: #{tpu_custom_call.1} parent=31 // pred_check_branch
          %377 = sbr.rel (%p375) target = $region52
        $region51: #{tpu_custom_call.1} parent=31 // pred_region
          %s379 = ssub.s32 128, 128
          %380 = vsyncadd %s371, %s379
          %s381 = smul.addr %s28, 2
          %s382 = sadd.s32 %s29, %s381
          %s383 = smul.addr %s382, 128
          %s384 = scalar_lea.hbm %s3, %s383
          %s386 = sshll.u32 %s374, 4
          %s387 = int_to_ptr.vmem [resolvable:$true] %s386
          %389 = dma.vmem_to_hbm [thread:$0]  %s387, 128, %s384, %s371
        $region52: #{tpu_custom_call.1} parent=31 // pred_fallthru
          _
      $region32: #{tpu_custom_call.1} parent=5 // pred_fallthru
        _
      %p390 = scmp.le.s32.totalorder 2, %s18
      // Predicated region
      $region53: #{tpu_custom_call.1} parent=5 // pred_check
        %p391 = pneg %p390
      $region54: #{tpu_custom_call.1} parent=5 // pred_check_branch
        %393 = sbr.rel (%p391) target = $region56
      $region55: #{tpu_custom_call.1} parent=5 // pred_region
        %s394 = ssub.s32 %s18, 2
        // Predicated region
        $region57: #{tpu_custom_call.1} parent=55 // pred_check
          %p395 = pneg %p145
        $region58: #{tpu_custom_call.1} parent=55 // pred_check_branch
          %397 = sbr.rel (%p395) target = $region60
        $region59: #{tpu_custom_call.1} parent=55 // pred_region
          %s398 = sand.u32 %s130, 1
          %s399 = scalar_lea.sflag [#allocation5], %s398
          %s400 = sand.u32 %s130, 1
          %s401 = smul.addr %s400, 8
          %s402 = scalar_lea.vmem [#allocation8], %s401
          %403 = dma.done %s399, 128
        $region60: #{tpu_custom_call.1} parent=55 // pred_fallthru
          _
      $region56: #{tpu_custom_call.1} parent=5 // pred_fallthru
        _
    $region6: #{tpu_custom_call.1} parent=1 // loop_footer
      %s22 = sadd.s32 1, %s18
    $region7: #{tpu_custom_call.1} parent=1 // loop_footer_branch
      %17 = sbr.rel target = $region3
    $region8: #{tpu_custom_call.1} parent=1 // loop_exit
      _
    %404 = vsyncpa [#allocation4], 1
    %s405 = scalar_lea.sflag [#allocation4], 1
    %406 = vsyncpa %s405, 1
    %407 = vsyncpa [#allocation7], 1
    %s408 = scalar_lea.sflag [#allocation7], 1
    %409 = vsyncpa %s408, 1
    %410 = vsyncpa [#allocation5], 1
    %s411 = scalar_lea.sflag [#allocation5], 1
    %412 = vsyncpa %s411, 1

</llo_original>
